<compile_context>
chip_gen: v6e
topology: v6e:2x2x1
jax: 0.10.0
libtpu: 0.0.40
codegen_flags: <defaults>
</compile_context>

<pallas_src>
import functools

import jax
import jax.numpy as jnp
from jax.experimental import pallas as pl
from jax.experimental.pallas import tpu as pltpu


def _make_conv_deriv_kernel(der_filter, resol, h_in, w_in, ksize):
    """Build a Pallas kernel closure for a fixed 2D derivative stencil.

    Kernel block layout: x_ref = (h_in, w_in, n_tile)  [H outer, W sublanes,
    batch on lanes], o_ref = (h_out, w_out, n_tile).
    """
    h_out = h_in - (ksize - 1)
    w_out = w_in - (ksize - 1)
    inv_resol = 1.0 / float(resol)

    # der_filter has PyTorch conv-weight shape (out_ch=1, in_ch=1, k, k).
    # Fold 1/resol into the static tap weights and drop zero taps.
    taps = []
    for di in range(ksize):
        for dj in range(ksize):
            w = float(der_filter[0][0][di][dj])
            if w != 0.0:
                taps.append((di, dj, w * inv_resol))
    assert taps, "DerFilter must have at least one nonzero tap"

    def kernel(x_ref, o_ref):
        # First tap initializes the accumulator (no zeros + add).
        di0, dj0, w0 = taps[0]
        acc = x_ref[pl.ds(di0, h_out), pl.ds(dj0, w_out), :].astype(jnp.float32) * w0
        # Remaining taps: shifted multiply-add on the VPU.  di selects rows on
        # the outer axis, dj shifts along sublanes; lanes (batch) untouched.
        for di, dj, w in taps[1:]:
            acc = acc + (
                x_ref[pl.ds(di, h_out), pl.ds(dj, w_out), :].astype(jnp.float32) * w
            )
        o_ref[...] = acc.astype(o_ref.dtype)

    return kernel, h_out, w_out, len(taps)


def conv2d_derivative(x, der_filter, resol, kernel_size=3):
    """x: (N, 1, H, W) float32 -> (N, 1, H-k+1, W-k+1) float32."""
    n, c, h, w = x.shape
    assert c == 1, "Conv2dDerivative uses a single input channel"

    kernel, h_out, w_out, n_taps = _make_conv_deriv_kernel(
        der_filter, resol, h, w, kernel_size
    )

    # Lane-dense layout: (H, W, N) so batch maps onto the 128-lane axis.
    x_hwn = jnp.transpose(x.reshape(n, h, w), (1, 2, 0))  # (H, W, N)

    # Batch tile: a multiple of 128 when possible (dense lanes, unmasked
    # stores, >=2 grid steps for v7x's two TensorCores); otherwise take the
    # full batch in one block (block == full dim satisfies the (8,128) rule).
    if n % 128 == 0 and n // 128 >= 2:
        n_tile = 128
    else:
        n_tile = n
    num_tiles = n // n_tile

    itemsize = jnp.dtype(x.dtype).itemsize
    in_block_bytes = h * w * n_tile * itemsize
    out_block_bytes = h_out * w_out * n_tile * itemsize
    # VMEM guard: double-buffered footprint must stay well under the scoped
    # limit (32 MiB default; v7x has only 64 MiB physical VMEM per core).
    assert 2 * (in_block_bytes + out_block_bytes) < 24 * 1024 * 1024, (
        "block too large for VMEM; shrink the batch tile or tile H with a "
        f"{kernel_size - 1}-row halo"
    )

    cost = pl.CostEstimate(
        flops=2 * n_taps * n * h_out * w_out,
        transcendentals=0,
        bytes_accessed=n * h * w * itemsize + n * h_out * w_out * itemsize,
    )

    out_hwn = pl.pallas_call(
        kernel,
        out_shape=jax.ShapeDtypeStruct((h_out, w_out, n), x.dtype),
        grid_spec=pltpu.PrefetchScalarGridSpec(
            num_scalar_prefetch=0,
            grid=(num_tiles,),
            in_specs=[pl.BlockSpec((h, w, n_tile), lambda i: (0, 0, i))],
            out_specs=pl.BlockSpec((h_out, w_out, n_tile), lambda i: (0, 0, i)),
        ),
        compiler_params=pltpu.CompilerParams(
            dimension_semantics=("parallel",)
        ),
        cost_estimate=cost,
    )(x_hwn)

    # Back to NCHW (layout plumbing outside the kernel).
    return jnp.transpose(out_hwn, (2, 0, 1)).reshape(n, 1, h_out, w_out)


if __name__ == "__main__":
    # Deterministic "DerFilter": the discrete 2D Laplacian stencil (as used in
    # the 2D Burgers evaluation script), with a grid-resolution scale.
    lap_2d_op = [[[[0.0, 1.0, 0.0],
                   [1.0, -4.0, 1.0],
                   [0.0, 1.0, 0.0]]]]          # (out=1, in=1, 3, 3)
    dx = 1.0 / 16.0
    resol = dx * dx

    # Small 16x16 fields; batch of 256 time-slices so lanes are dense (128)
    # and the grid has 2 parallel steps.
    key = jax.random.PRNGKey(0)
    x = jax.random.normal(key, (256, 1, 16, 16), dtype=jnp.float32)  # NCHW

    fn = jax.jit(functools.partial(
        conv2d_derivative, der_filter=lap_2d_op, resol=resol, kernel_size=3))
    out = fn(x)
    out = jax.block_until_ready(out)

    # Reference: lax conv (valid padding, no bias), then / resol.
    w_ref = jnp.asarray(lap_2d_op, dtype=jnp.float32)
    ref = jax.lax.conv_general_dilated(
        x, w_ref, window_strides=(1, 1), padding="VALID",
        dimension_numbers=("NCHW", "OIHW", "NCHW")) / resol

    assert out.shape == (256, 1, 14, 14), out.shape
    assert jnp.allclose(out, ref, atol=1e-3, rtol=1e-4), float(
        jnp.max(jnp.abs(out - ref)))

    print("KERNEL_OK")
</pallas_src>

<mosaic_0001>
module attributes {stable_mosaic.version = 11 : i64} {
  func.func @kernel(%arg0: i32, %arg1: memref<16x16x128xf32, #tpu.memory_space<vmem>>, %arg2: memref<14x14x128xf32, #tpu.memory_space<vmem>>) attributes {dimension_semantics = [#tpu.dimension_semantics<parallel>], iteration_bounds = array<i64: 2>, scalar_prefetch = 0 : i64, scratch_operands = 0 : i64, tpu.core_type = #tpu.core_type<tc>, window_params = [{transform_indices = @transform_0, window_bounds = array<i64: 16, 16, 128>}, {transform_indices = @transform_1, window_bounds = array<i64: 14, 14, 128>}]} {
    %c0 = arith.constant 0 : index
    %c1 = arith.constant 1 : index
    %c0_0 = arith.constant 0 : index
    %0 = vector.load %arg1[%c0, %c1, %c0_0] : memref<16x16x128xf32, #tpu.memory_space<vmem>>, vector<14x14x128xf32>
    %cst = arith.constant 2.560000e+02 : f32
    %1 = vector.broadcast %cst : f32 to vector<14x14x128xf32>
    %2 = arith.mulf %0, %1 : vector<14x14x128xf32>
    %c1_1 = arith.constant 1 : index
    %c0_2 = arith.constant 0 : index
    %c0_3 = arith.constant 0 : index
    %3 = vector.load %arg1[%c1_1, %c0_2, %c0_3] : memref<16x16x128xf32, #tpu.memory_space<vmem>>, vector<14x14x128xf32>
    %cst_4 = arith.constant 2.560000e+02 : f32
    %4 = vector.broadcast %cst_4 : f32 to vector<14x14x128xf32>
    %5 = arith.mulf %3, %4 : vector<14x14x128xf32>
    %6 = arith.addf %2, %5 : vector<14x14x128xf32>
    %c1_5 = arith.constant 1 : index
    %c1_6 = arith.constant 1 : index
    %c0_7 = arith.constant 0 : index
    %7 = vector.load %arg1[%c1_5, %c1_6, %c0_7] : memref<16x16x128xf32, #tpu.memory_space<vmem>>, vector<14x14x128xf32>
    %cst_8 = arith.constant -1.024000e+03 : f32
    %8 = vector.broadcast %cst_8 : f32 to vector<14x14x128xf32>
    %9 = arith.mulf %7, %8 : vector<14x14x128xf32>
    %10 = arith.addf %6, %9 : vector<14x14x128xf32>
    %c1_9 = arith.constant 1 : index
    %c2 = arith.constant 2 : index
    %c0_10 = arith.constant 0 : index
    %11 = vector.load %arg1[%c1_9, %c2, %c0_10] : memref<16x16x128xf32, #tpu.memory_space<vmem>>, vector<14x14x128xf32>
    %cst_11 = arith.constant 2.560000e+02 : f32
    %12 = vector.broadcast %cst_11 : f32 to vector<14x14x128xf32>
    %13 = arith.mulf %11, %12 : vector<14x14x128xf32>
    %14 = arith.addf %10, %13 : vector<14x14x128xf32>
    %c2_12 = arith.constant 2 : index
    %c1_13 = arith.constant 1 : index
    %c0_14 = arith.constant 0 : index
    %15 = vector.load %arg1[%c2_12, %c1_13, %c0_14] : memref<16x16x128xf32, #tpu.memory_space<vmem>>, vector<14x14x128xf32>
    %cst_15 = arith.constant 2.560000e+02 : f32
    %16 = vector.broadcast %cst_15 : f32 to vector<14x14x128xf32>
    %17 = arith.mulf %15, %16 : vector<14x14x128xf32>
    %18 = arith.addf %14, %17 : vector<14x14x128xf32>
    %c0_16 = arith.constant 0 : index
    %c0_17 = arith.constant 0 : index
    %c0_18 = arith.constant 0 : index
    %19 = vector.load %arg2[%c0_16, %c0_17, %c0_18] : memref<14x14x128xf32, #tpu.memory_space<vmem>>, vector<14x14x128xf32>
    tpu.vector_store %arg2[%c0_16, %c0_17, %c0_18], %18 {strides = array<i32>} : memref<14x14x128xf32, #tpu.memory_space<vmem>>, vector<14x14x128xf32>,
    return
  }
  func.func @transform_0(%arg0: i32) -> (i32, i32, i32) {
    %c0_i32 = arith.constant 0 : i32
    %c0_i32_0 = arith.constant 0 : i32
    %c0_i32_1 = arith.constant 0 : i32
    return %c0_i32, %c0_i32_0, %arg0 : i32, i32, i32
  }
  func.func @transform_1(%arg0: i32) -> (i32, i32, i32) {
    %c0_i32 = arith.constant 0 : i32
    %c0_i32_0 = arith.constant 0 : i32
    %c0_i32_1 = arith.constant 0 : i32
    return %c0_i32, %c0_i32_0, %arg0 : i32, i32, i32
  }
}

</mosaic_0001>

<llo_original>
// kernel: conv2d_derivative.1
$region0: #{conv2d_derivative.1}
  #allocation0 [shape = 'u32[]', space=smem, size = 0x4, offset = 0x4, fixed_abs, tag = 'smem constant byte address 0x4 - core index']
  #allocation1 [shape = 'u32[144,128]{1,0:T(1,128)}', space=vmem, size = 0x12000, scoped, tag = 'internal scratch']
  %s0 = inlined_call_operand.hbm [shape: f32[16,16,256], index: 0, kind: input, shape index: {}]
  %s1 = inlined_call_operand.vmem [shape: f32[14,14,256], index: 1, kind: output, shape index: {}]
  %s2 = sld [smem:[#allocation0]]
  $region75: #{conv2d_derivative.1} parent=0
    _
  %s4 = ssub.s32 1, %s2
  %s5 = scalar_select 0, %s4, %s2
  $region1: #{conv2d_derivative.1} parent=0
    #allocation2 [shape = 'u8[262144]{0}', space=vmem, size = 0x40000, scoped, tag = 'input window, operand 0']
    #allocation3 [shape = 's32[2]{0}', space=sflag, size = 0x8, scoped, tag = 'scoped memory for conv2d_derivative.1']
    #allocation4 [shape = 'u8[229376]{0}', space=vmem, size = 0x38000, scoped, tag = 'output window, operand 0']
    %6 = vsyncpa [#allocation3], 0
    %s7 = scalar_lea.sflag [#allocation3], 1
    %8 = vsyncpa %s7, 0
    loop: start=0, step=1, limit=4
    $region2: #{conv2d_derivative.1} parent=1 // loop_pre_header
      _
    $region3: #{conv2d_derivative.1} parent=1 // loop_header
      %s10 = sphi 0, %s14
      %p11 = scmp.ge.s32.totalorder %s10, 4
      %s20 = sphi 0, %s22
      %s23 = sphi 0, %s20
      %s24 = sphi 0, %s23
      %s40 = sphi 0, %s24
      %s46 = sphi 0, %s48
      %s49 = sphi 0, %s46
      %s50 = sphi 0, %s49
      %s66 = sphi 0, %s50
    $region4: #{conv2d_derivative.1} parent=1 // loop_header_branch
      %13 = sbr.rel (%p11) target = $region8
    $region5: #{conv2d_derivative.1} parent=1 // loop_body
      %s15 = ssub.s32 %s10, 1
      %s16 = ssub.s32 %s10, 2
      %s17 = sadd.s32 %s10, 1
      %s18 = ssub.s32 %s10, %s17
      %p19 = scmp.eq.s32.totalorder %s18, 0
      %s21 = sadd.s32 %s20, 1
      %s22 = scalar_select %p19, %s20, %s21
      %p25 = pneg %p19
      %p26 = scmp.eq.s32.totalorder %s10, 1
      %p27 = por %p25, %p26
      %p28 = scmp.ne.s32.totalorder %s20, %s23
      %p29 = scmp.eq.s32.totalorder %s10, 0
      %p30 = por %p28, %p29
      %p31 = scmp.ne.s32.totalorder %s20, %s23
      %p32 = scmp.eq.s32.totalorder %s15, 1
      %p33 = por %p31, %p32
      %p34 = scmp.ne.s32.totalorder %s23, %s24
      %p35 = scmp.eq.s32.totalorder %s15, 0
      %p36 = por %p34, %p35
      %p37 = scmp.ne.s32.totalorder %s23, %s24
      %p38 = scmp.eq.s32.totalorder %s16, 1
      %p39 = por %p37, %p38
      %p41 = scmp.ne.s32.totalorder %s24, %s40
      %p42 = scmp.eq.s32.totalorder %s16, 0
      %p43 = por %p41, %p42
      %s44 = ssub.s32 %s10, %s17
      %p45 = scmp.eq.s32.totalorder %s44, 0
      %s47 = sadd.s32 %s46, 1
      %s48 = scalar_select %p45, %s46, %s47
      %p51 = pneg %p45
      %p52 = scmp.eq.s32.totalorder %s10, 1
      %p53 = por %p51, %p52
      %p54 = scmp.ne.s32.totalorder %s46, %s49
      %p55 = scmp.eq.s32.totalorder %s10, 0
      %p56 = por %p54, %p55
      %p57 = scmp.ne.s32.totalorder %s46, %s49
      %p58 = scmp.eq.s32.totalorder %s15, 1
      %p59 = por %p57, %p58
      %p60 = scmp.ne.s32.totalorder %s49, %s50
      %p61 = scmp.eq.s32.totalorder %s15, 0
      %p62 = por %p60, %p61
      %p63 = scmp.ne.s32.totalorder %s49, %s50
      %p64 = scmp.eq.s32.totalorder %s16, 1
      %p65 = por %p63, %p64
      %p67 = scmp.ne.s32.totalorder %s50, %s66
      %p68 = scmp.eq.s32.totalorder %s16, 0
      %p69 = por %p67, %p68
      %p70 = scmp.le.s32.totalorder 1, %s10
      %p71 = scmp.lt.s32.totalorder %s10, 3
      %p72 = pnand %p70, %p71
      %p73 = pneg %p72
      // Predicated region
      $region9: #{conv2d_derivative.1} parent=5 // pred_check
        _
      $region10: #{conv2d_derivative.1} parent=5 // pred_check_branch
        %75 = sbr.rel (%p72) target = $region12
      $region11: #{conv2d_derivative.1} parent=5 // pred_region
        %s76 = ssub.s32 %s10, 1
      $region12: #{conv2d_derivative.1} parent=5 // pred_fallthru
        _
      %p77 = scmp.lt.s32.totalorder %s10, 2
      // Predicated region
      $region13: #{conv2d_derivative.1} parent=5 // pred_check
        %p78 = pneg %p77
      $region14: #{conv2d_derivative.1} parent=5 // pred_check_branch
        %80 = sbr.rel (%p78) target = $region16
      $region15: #{conv2d_derivative.1} parent=5 // pred_region
        // Predicated region
        $region17: #{conv2d_derivative.1} parent=15 // pred_check
          %p81 = pneg %p30
        $region18: #{conv2d_derivative.1} parent=15 // pred_check_branch
          %83 = sbr.rel (%p81) target = $region20
        $region19: #{conv2d_derivative.1} parent=15 // pred_region
          %s84 = sand.u32 %s20, 1
          %s85 = scalar_lea.sflag [#allocation3], %s84
          %s86 = sand.u32 %s20, 1
          %s87 = smul.addr %s86, 256
          %s88 = scalar_lea.vmem [#allocation2], %s87
          %s90 = ssub.s32 4096, 4096
          %91 = vsyncadd %s85, %s90
          %s92 = smul.addr %s10, 128
          %s93 = scalar_lea.hbm %s0, %s92
          %s94 = sshll.u32 %s88, 4
          %s95 = int_to_ptr.vmem [resolvable:$true] %s94
          %100 = dma.hbm_to_vmem [thread:$0]  %s93, 4096, %s95, %s85, 256, 128, 8
        $region20: #{conv2d_derivative.1} parent=15 // pred_fallthru
          _
      $region16: #{conv2d_derivative.1} parent=5 // pred_fallthru
        _
      %p101 = scmp.le.s32.totalorder 1, %s10
      %p102 = scmp.lt.s32.totalorder %s10, 3
      %p103 = pnand %p101, %p102
      %p104 = pneg %p103
      // Predicated region
      $region21: #{conv2d_derivative.1} parent=5 // pred_check
        _
      $region22: #{conv2d_derivative.1} parent=5 // pred_check_branch
        %106 = sbr.rel (%p103) target = $region24
      $region23: #{conv2d_derivative.1} parent=5 // pred_region
        %s107 = ssub.s32 %s10, 1
        %s108 = sand.u32 %s23, 1
        %s109 = scalar_lea.sflag [#allocation3], %s108
        %s110 = sand.u32 %s23, 1
        %s111 = smul.addr %s110, 256
        %s112 = scalar_lea.vmem [#allocation2], %s111
        // Predicated region
        $region25: #{conv2d_derivative.1} parent=23 // pred_check
          %p113 = pneg %p36
        $region26: #{conv2d_derivative.1} parent=23 // pred_check_branch
          %115 = sbr.rel (%p113) target = $region28
        $region27: #{conv2d_derivative.1} parent=23 // pred_region
          %116 = dma.done %s109, 4096
        $region28: #{conv2d_derivative.1} parent=23 // pred_fallthru
          _
        %s117 = sand.u32 %s23, 1
        %s118 = scalar_lea.sflag [#allocation3], %s117
        %s119 = sand.u32 %s23, 1
        %s120 = smul.addr %s119, 256
        %s121 = scalar_lea.vmem [#allocation2], %s120
        %p122 = pneg %p36
        %p123 = pneg %p33
        %p124 = pneg %p62
        %p125 = pneg %p59
        %s126 = sand.u32 %s49, 1
        %s127 = sand.u32 %s49, 1
        %s128 = smul.addr %s127, 224
        %s129 = scalar_lea.vmem [#allocation4], %s128
        %v130 = vld [vmem:[%s112 + $0x1] sm:$0xff]
        %v131 = vld [vmem:[%s112 + $0x9] sm:$0x3f]
        %v132 = vld [vmem:[%s112 + $0x11] sm:$0xff]
        %v133 = vld [vmem:[%s112 + $0x19] sm:$0x3f]
        %v134 = vld [vmem:[%s112 + $0x21] sm:$0xff]
        %v135 = vld [vmem:[%s112 + $0x29] sm:$0x3f]
        %v136 = vld [vmem:[%s112 + $0x31] sm:$0xff]
        %v137 = vld [vmem:[%s112 + $0x39] sm:$0x3f]
        %v138 = vld [vmem:[%s112 + $0x41] sm:$0xff]
        %v139 = vld [vmem:[%s112 + $0x49] sm:$0x3f]
        %v140 = vld [vmem:[%s112 + $0x51] sm:$0xff]
        %v141 = vld [vmem:[%s112 + $0x59] sm:$0x3f]
        %v142 = vld [vmem:[%s112 + $0x61] sm:$0xff]
        %v143 = vld [vmem:[%s112 + $0x69] sm:$0x3f]
        %v144 = vld [vmem:[%s112 + $0x71] sm:$0xff]
        %v145 = vld [vmem:[%s112 + $0x79] sm:$0x3f]
        %v146 = vld [vmem:[%s112 + $0x81] sm:$0xff]
        %v147 = vld [vmem:[%s112 + $0x89] sm:$0x3f]
        %v148 = vld [vmem:[%s112 + $0x91] sm:$0xff]
        %v149 = vld [vmem:[%s112 + $0x99] sm:$0x3f]
        %v150 = vld [vmem:[%s112 + $0xa1] sm:$0xff]
        %v151 = vld [vmem:[%s112 + $0xa9] sm:$0x3f]
        %v152 = vld [vmem:[%s112 + $0xb1] sm:$0xff]
        %v153 = vld [vmem:[%s112 + $0xb9] sm:$0x3f]
        %v154 = vld [vmem:[%s112 + $0xc1] sm:$0xff]
        %v155 = vld [vmem:[%s112 + $0xc9] sm:$0x3f]
        %v156 = vld [vmem:[%s112 + $0xd1] sm:$0xff]
        %v157 = vld [vmem:[%s112 + $0xd9] sm:$0x3f]
        %v158 = vmul.f32 %v130, 256.0
        %v159 = vmul.f32 %v131, 256.0
        %v160 = vmul.f32 %v132, 256.0
        %v161 = vmul.f32 %v133, 256.0
        %v162 = vmul.f32 %v134, 256.0
        %v163 = vmul.f32 %v135, 256.0
        %v164 = vmul.f32 %v136, 256.0
        %v165 = vmul.f32 %v137, 256.0
        %v166 = vmul.f32 %v138, 256.0
        %v167 = vmul.f32 %v139, 256.0
        %v168 = vmul.f32 %v140, 256.0
        %v169 = vmul.f32 %v141, 256.0
        %v170 = vmul.f32 %v142, 256.0
        %v171 = vmul.f32 %v143, 256.0
        %v172 = vmul.f32 %v144, 256.0
        %v173 = vmul.f32 %v145, 256.0
        %v174 = vmul.f32 %v146, 256.0
        %v175 = vmul.f32 %v147, 256.0
        %v176 = vmul.f32 %v148, 256.0
        %v177 = vmul.f32 %v149, 256.0
        %v178 = vmul.f32 %v150, 256.0
        %v179 = vmul.f32 %v151, 256.0
        %v180 = vmul.f32 %v152, 256.0
        %v181 = vmul.f32 %v153, 256.0
        %v182 = vmul.f32 %v154, 256.0
        %v183 = vmul.f32 %v155, 256.0
        %v184 = vmul.f32 %v156, 256.0
        %v185 = vmul.f32 %v157, 256.0
        %s186 = scalar_lea.vmem %s112, 16 [#allocation2]
        %v187 = vld [vmem:[%s186] sm:$0xff]
        %v188 = vld [vmem:[%s186 + $0x8] sm:$0x3f]
        %v189 = vld [vmem:[%s186 + $0x10] sm:$0xff]
        %v190 = vld [vmem:[%s186 + $0x18] sm:$0x3f]
        %v191 = vld [vmem:[%s186 + $0x20] sm:$0xff]
        %v192 = vld [vmem:[%s186 + $0x28] sm:$0x3f]
        %v193 = vld [vmem:[%s186 + $0x30] sm:$0xff]
        %v194 = vld [vmem:[%s186 + $0x38] sm:$0x3f]
        %v195 = vld [vmem:[%s186 + $0x40] sm:$0xff]
        %v196 = vld [vmem:[%s186 + $0x48] sm:$0x3f]
        %v197 = vld [vmem:[%s186 + $0x50] sm:$0xff]
        %v198 = vld [vmem:[%s186 + $0x58] sm:$0x3f]
        %v199 = vld [vmem:[%s186 + $0x60] sm:$0xff]
        %v200 = vld [vmem:[%s186 + $0x68] sm:$0x3f]
        %v201 = vld [vmem:[%s186 + $0x70] sm:$0xff]
        %v202 = vld [vmem:[%s186 + $0x78] sm:$0x3f]
        %v203 = vld [vmem:[%s186 + $0x80] sm:$0xff]
        %v204 = vld [vmem:[%s186 + $0x88] sm:$0x3f]
        %v205 = vld [vmem:[%s186 + $0x90] sm:$0xff]
        %v206 = vld [vmem:[%s186 + $0x98] sm:$0x3f]
        %v207 = vld [vmem:[%s186 + $0xa0] sm:$0xff]
        %v208 = vld [vmem:[%s186 + $0xa8] sm:$0x3f]
        %v209 = vld [vmem:[%s186 + $0xb0] sm:$0xff]
        %v210 = vld [vmem:[%s186 + $0xb8] sm:$0x3f]
        %v211 = vld [vmem:[%s186 + $0xc0] sm:$0xff]
        %v212 = vld [vmem:[%s186 + $0xc8] sm:$0x3f]
        %v213 = vld [vmem:[%s186 + $0xd0] sm:$0xff]
        %v214 = vld [vmem:[%s186 + $0xd8] sm:$0x3f]
        %v215 = vmul.f32 %v187, 256.0
        %v216 = vmul.f32 %v188, 256.0
        %v217 = vmul.f32 %v189, 256.0
        %v218 = vmul.f32 %v190, 256.0
        %v219 = vmul.f32 %v191, 256.0
        %v220 = vmul.f32 %v192, 256.0
        %v221 = vmul.f32 %v193, 256.0
        %v222 = vmul.f32 %v194, 256.0
        %v223 = vmul.f32 %v195, 256.0
        %v224 = vmul.f32 %v196, 256.0
        %v225 = vmul.f32 %v197, 256.0
        %v226 = vmul.f32 %v198, 256.0
        %v227 = vmul.f32 %v199, 256.0
        %v228 = vmul.f32 %v200, 256.0
        %v229 = vmul.f32 %v201, 256.0
        %v230 = vmul.f32 %v202, 256.0
        %v231 = vmul.f32 %v203, 256.0
        %v232 = vmul.f32 %v204, 256.0
        %v233 = vmul.f32 %v205, 256.0
        %v234 = vmul.f32 %v206, 256.0
        %v235 = vmul.f32 %v207, 256.0
        %v236 = vmul.f32 %v208, 256.0
        %v237 = vmul.f32 %v209, 256.0
        %v238 = vmul.f32 %v210, 256.0
        %v239 = vmul.f32 %v211, 256.0
        %v240 = vmul.f32 %v212, 256.0
        %v241 = vmul.f32 %v213, 256.0
        %v242 = vmul.f32 %v214, 256.0
        %v243 = vadd.f32 %v158, %v215
        %v244 = vadd.f32 %v159, %v216
        %v245 = vadd.f32 %v160, %v217
        %v246 = vadd.f32 %v161, %v218
        %v247 = vadd.f32 %v162, %v219
        %v248 = vadd.f32 %v163, %v220
        %v249 = vadd.f32 %v164, %v221
        %v250 = vadd.f32 %v165, %v222
        %v251 = vadd.f32 %v166, %v223
        %v252 = vadd.f32 %v167, %v224
        %v253 = vadd.f32 %v168, %v225
        %v254 = vadd.f32 %v169, %v226
        %v255 = vadd.f32 %v170, %v227
        %v256 = vadd.f32 %v171, %v228
        %v257 = vadd.f32 %v172, %v229
        %v258 = vadd.f32 %v173, %v230
        %v259 = vadd.f32 %v174, %v231
        %v260 = vadd.f32 %v175, %v232
        %v261 = vadd.f32 %v176, %v233
        %v262 = vadd.f32 %v177, %v234
        %v263 = vadd.f32 %v178, %v235
        %v264 = vadd.f32 %v179, %v236
        %v265 = vadd.f32 %v180, %v237
        %v266 = vadd.f32 %v181, %v238
        %v267 = vadd.f32 %v182, %v239
        %v268 = vadd.f32 %v183, %v240
        %v269 = vadd.f32 %v184, %v241
        %v270 = vadd.f32 %v185, %v242
        %v271 = vld [vmem:[%s186 + $0x1] sm:$0xff]
        %v272 = vld [vmem:[%s186 + $0x9] sm:$0x3f]
        %v273 = vld [vmem:[%s186 + $0x11] sm:$0xff]
        %v274 = vld [vmem:[%s186 + $0x19] sm:$0x3f]
        %v275 = vld [vmem:[%s186 + $0x21] sm:$0xff]
        %v276 = vld [vmem:[%s186 + $0x29] sm:$0x3f]
        %v277 = vld [vmem:[%s186 + $0x31] sm:$0xff]
        %v278 = vld [vmem:[%s186 + $0x39] sm:$0x3f]
        %v279 = vld [vmem:[%s186 + $0x41] sm:$0xff]
        %v280 = vld [vmem:[%s186 + $0x49] sm:$0x3f]
        %v281 = vld [vmem:[%s186 + $0x51] sm:$0xff]
        %v282 = vld [vmem:[%s186 + $0x59] sm:$0x3f]
        %v283 = vld [vmem:[%s186 + $0x61] sm:$0xff]
        %v284 = vld [vmem:[%s186 + $0x69] sm:$0x3f]
        %v285 = vld [vmem:[%s186 + $0x71] sm:$0xff]
        %v286 = vld [vmem:[%s186 + $0x79] sm:$0x3f]
        %v287 = vld [vmem:[%s186 + $0x81] sm:$0xff]
        %v288 = vld [vmem:[%s186 + $0x89] sm:$0x3f]
        %v289 = vld [vmem:[%s186 + $0x91] sm:$0xff]
        %v290 = vld [vmem:[%s186 + $0x99] sm:$0x3f]
        %v291 = vld [vmem:[%s186 + $0xa1] sm:$0xff]
        %v292 = vld [vmem:[%s186 + $0xa9] sm:$0x3f]
        %v293 = vld [vmem:[%s186 + $0xb1] sm:$0xff]
        %v294 = vld [vmem:[%s186 + $0xb9] sm:$0x3f]
        %v295 = vld [vmem:[%s186 + $0xc1] sm:$0xff]
        %v296 = vld [vmem:[%s186 + $0xc9] sm:$0x3f]
        %v297 = vld [vmem:[%s186 + $0xd1] sm:$0xff]
        %v298 = vld [vmem:[%s186 + $0xd9] sm:$0x3f]
        %v299 = vmul.f32 %v271, -1024.0
        %v300 = vmul.f32 %v272, -1024.0
        %v301 = vmul.f32 %v273, -1024.0
        %v302 = vmul.f32 %v274, -1024.0
        %v303 = vmul.f32 %v275, -1024.0
        %v304 = vmul.f32 %v276, -1024.0
        %v305 = vmul.f32 %v277, -1024.0
        %v306 = vmul.f32 %v278, -1024.0
        %v307 = vmul.f32 %v279, -1024.0
        %v308 = vmul.f32 %v280, -1024.0
        %v309 = vmul.f32 %v281, -1024.0
        %v310 = vmul.f32 %v282, -1024.0
        %v311 = vmul.f32 %v283, -1024.0
        %v312 = vmul.f32 %v284, -1024.0
        %v313 = vmul.f32 %v285, -1024.0
        %v314 = vmul.f32 %v286, -1024.0
        %v315 = vmul.f32 %v287, -1024.0
        %v316 = vmul.f32 %v288, -1024.0
        %v317 = vmul.f32 %v289, -1024.0
        %v318 = vmul.f32 %v290, -1024.0
        %v319 = vmul.f32 %v291, -1024.0
        %v320 = vmul.f32 %v292, -1024.0
        %v321 = vmul.f32 %v293, -1024.0
        %v322 = vmul.f32 %v294, -1024.0
        %v323 = vmul.f32 %v295, -1024.0
        %v324 = vmul.f32 %v296, -1024.0
        %v325 = vmul.f32 %v297, -1024.0
        %v326 = vmul.f32 %v298, -1024.0
        %v327 = vadd.f32 %v243, %v299
        %v328 = vadd.f32 %v244, %v300
        %v329 = vadd.f32 %v245, %v301
        %v330 = vadd.f32 %v246, %v302
        %v331 = vadd.f32 %v247, %v303
        %v332 = vadd.f32 %v248, %v304
        %v333 = vadd.f32 %v249, %v305
        %v334 = vadd.f32 %v250, %v306
        %v335 = vadd.f32 %v251, %v307
        %v336 = vadd.f32 %v252, %v308
        %v337 = vadd.f32 %v253, %v309
        %v338 = vadd.f32 %v254, %v310
        %v339 = vadd.f32 %v255, %v311
        %v340 = vadd.f32 %v256, %v312
        %v341 = vadd.f32 %v257, %v313
        %v342 = vadd.f32 %v258, %v314
        %v343 = vadd.f32 %v259, %v315
        %v344 = vadd.f32 %v260, %v316
        %v345 = vadd.f32 %v261, %v317
        %v346 = vadd.f32 %v262, %v318
        %v347 = vadd.f32 %v263, %v319
        %v348 = vadd.f32 %v264, %v320
        %v349 = vadd.f32 %v265, %v321
        %v350 = vadd.f32 %v266, %v322
        %v351 = vadd.f32 %v267, %v323
        %v352 = vadd.f32 %v268, %v324
        %v353 = vadd.f32 %v269, %v325
        %v354 = vadd.f32 %v270, %v326
        %v355 = vld [vmem:[%s186 + $0x2] sm:$0xff]
        %v356 = vld [vmem:[%s186 + $0xa] sm:$0x3f]
        %v357 = vld [vmem:[%s186 + $0x12] sm:$0xff]
        %v358 = vld [vmem:[%s186 + $0x1a] sm:$0x3f]
        %v359 = vld [vmem:[%s186 + $0x22] sm:$0xff]
        %v360 = vld [vmem:[%s186 + $0x2a] sm:$0x3f]
        %v361 = vld [vmem:[%s186 + $0x32] sm:$0xff]
        %v362 = vld [vmem:[%s186 + $0x3a] sm:$0x3f]
        %v363 = vld [vmem:[%s186 + $0x42] sm:$0xff]
        %v364 = vld [vmem:[%s186 + $0x4a] sm:$0x3f]
        %v365 = vld [vmem:[%s186 + $0x52] sm:$0xff]
        %v366 = vld [vmem:[%s186 + $0x5a] sm:$0x3f]
        %v367 = vld [vmem:[%s186 + $0x62] sm:$0xff]
        %v368 = vld [vmem:[%s186 + $0x6a] sm:$0x3f]
        %v369 = vld [vmem:[%s186 + $0x72] sm:$0xff]
        %v370 = vld [vmem:[%s186 + $0x7a] sm:$0x3f]
        %v371 = vld [vmem:[%s186 + $0x82] sm:$0xff]
        %v372 = vld [vmem:[%s186 + $0x8a] sm:$0x3f]
        %v373 = vld [vmem:[%s186 + $0x92] sm:$0xff]
        %v374 = vld [vmem:[%s186 + $0x9a] sm:$0x3f]
        %v375 = vld [vmem:[%s186 + $0xa2] sm:$0xff]
        %v376 = vld [vmem:[%s186 + $0xaa] sm:$0x3f]
        %v377 = vld [vmem:[%s186 + $0xb2] sm:$0xff]
        %v378 = vld [vmem:[%s186 + $0xba] sm:$0x3f]
        %v379 = vld [vmem:[%s186 + $0xc2] sm:$0xff]
        %v380 = vld [vmem:[%s186 + $0xca] sm:$0x3f]
        %v381 = vld [vmem:[%s186 + $0xd2] sm:$0xff]
        %v382 = vld [vmem:[%s186 + $0xda] sm:$0x3f]
        %v383 = vmul.f32 %v355, 256.0
        %v384 = vmul.f32 %v356, 256.0
        %v385 = vmul.f32 %v357, 256.0
        %v386 = vmul.f32 %v358, 256.0
        %v387 = vmul.f32 %v359, 256.0
        %v388 = vmul.f32 %v360, 256.0
        %v389 = vmul.f32 %v361, 256.0
        %v390 = vmul.f32 %v362, 256.0
        %v391 = vmul.f32 %v363, 256.0
        %v392 = vmul.f32 %v364, 256.0
        %v393 = vmul.f32 %v365, 256.0
        %v394 = vmul.f32 %v366, 256.0
        %v395 = vmul.f32 %v367, 256.0
        %v396 = vmul.f32 %v368, 256.0
        %v397 = vmul.f32 %v369, 256.0
        %v398 = vmul.f32 %v370, 256.0
        %v399 = vmul.f32 %v371, 256.0
        %v400 = vmul.f32 %v372, 256.0
        %v401 = vmul.f32 %v373, 256.0
        %v402 = vmul.f32 %v374, 256.0
        %v403 = vmul.f32 %v375, 256.0
        %v404 = vmul.f32 %v376, 256.0
        %v405 = vmul.f32 %v377, 256.0
        %v406 = vmul.f32 %v378, 256.0
        %v407 = vmul.f32 %v379, 256.0
        %v408 = vmul.f32 %v380, 256.0
        %v409 = vmul.f32 %v381, 256.0
        %v410 = vmul.f32 %v382, 256.0
        %v411 = vadd.f32 %v327, %v383
        %v412 = vadd.f32 %v328, %v384
        %v413 = vadd.f32 %v329, %v385
        %v414 = vadd.f32 %v330, %v386
        %v415 = vadd.f32 %v331, %v387
        %v416 = vadd.f32 %v332, %v388
        %v417 = vadd.f32 %v333, %v389
        %v418 = vadd.f32 %v334, %v390
        %v419 = vadd.f32 %v335, %v391
        %v420 = vadd.f32 %v336, %v392
        %v421 = vadd.f32 %v337, %v393
        %v422 = vadd.f32 %v338, %v394
        %v423 = vadd.f32 %v339, %v395
        %v424 = vadd.f32 %v340, %v396
        %v425 = vadd.f32 %v341, %v397
        %v426 = vadd.f32 %v342, %v398
        %v427 = vadd.f32 %v343, %v399
        %v428 = vadd.f32 %v344, %v400
        %v429 = vadd.f32 %v345, %v401
        %v430 = vadd.f32 %v346, %v402
        %v431 = vadd.f32 %v347, %v403
        %v432 = vadd.f32 %v348, %v404
        %v433 = vadd.f32 %v349, %v405
        %v434 = vadd.f32 %v350, %v406
        %v435 = vadd.f32 %v351, %v407
        %v436 = vadd.f32 %v352, %v408
        %v437 = vadd.f32 %v353, %v409
        %v438 = vadd.f32 %v354, %v410
        %s439 = scalar_lea.vmem %s112, 32 [#allocation2]
        %v440 = vld [vmem:[%s439 + $0x1] sm:$0xff]
        %v441 = vld [vmem:[%s439 + $0x9] sm:$0x3f]
        %v442 = vld [vmem:[%s439 + $0x11] sm:$0xff]
        %v443 = vld [vmem:[%s439 + $0x19] sm:$0x3f]
        %v444 = vld [vmem:[%s439 + $0x21] sm:$0xff]
        %v445 = vld [vmem:[%s439 + $0x29] sm:$0x3f]
        %v446 = vld [vmem:[%s439 + $0x31] sm:$0xff]
        %v447 = vld [vmem:[%s439 + $0x39] sm:$0x3f]
        %v448 = vld [vmem:[%s439 + $0x41] sm:$0xff]
        %v449 = vld [vmem:[%s439 + $0x49] sm:$0x3f]
        %v450 = vld [vmem:[%s439 + $0x51] sm:$0xff]
        %v451 = vld [vmem:[%s439 + $0x59] sm:$0x3f]
        %v452 = vld [vmem:[%s439 + $0x61] sm:$0xff]
        %v453 = vld [vmem:[%s439 + $0x69] sm:$0x3f]
        %v454 = vld [vmem:[%s439 + $0x71] sm:$0xff]
        %v455 = vld [vmem:[%s439 + $0x79] sm:$0x3f]
        %v456 = vld [vmem:[%s439 + $0x81] sm:$0xff]
        %v457 = vld [vmem:[%s439 + $0x89] sm:$0x3f]
        %v458 = vld [vmem:[%s439 + $0x91] sm:$0xff]
        %v459 = vld [vmem:[%s439 + $0x99] sm:$0x3f]
        %v460 = vld [vmem:[%s439 + $0xa1] sm:$0xff]
        %v461 = vld [vmem:[%s439 + $0xa9] sm:$0x3f]
        %v462 = vld [vmem:[%s439 + $0xb1] sm:$0xff]
        %v463 = vld [vmem:[%s439 + $0xb9] sm:$0x3f]
        %v464 = vld [vmem:[%s439 + $0xc1] sm:$0xff]
        %v465 = vld [vmem:[%s439 + $0xc9] sm:$0x3f]
        %v466 = vld [vmem:[%s439 + $0xd1] sm:$0xff]
        %v467 = vld [vmem:[%s439 + $0xd9] sm:$0x3f]
        %v468 = vmul.f32 %v440, 256.0
        %v469 = vmul.f32 %v441, 256.0
        %v470 = vmul.f32 %v442, 256.0
        %v471 = vmul.f32 %v443, 256.0
        %v472 = vmul.f32 %v444, 256.0
        %v473 = vmul.f32 %v445, 256.0
        %v474 = vmul.f32 %v446, 256.0
        %v475 = vmul.f32 %v447, 256.0
        %v476 = vmul.f32 %v448, 256.0
        %v477 = vmul.f32 %v449, 256.0
        %v478 = vmul.f32 %v450, 256.0
        %v479 = vmul.f32 %v451, 256.0
        %v480 = vmul.f32 %v452, 256.0
        %v481 = vmul.f32 %v453, 256.0
        %v482 = vmul.f32 %v454, 256.0
        %v483 = vmul.f32 %v455, 256.0
        %v484 = vmul.f32 %v456, 256.0
        %v485 = vmul.f32 %v457, 256.0
        %v486 = vmul.f32 %v458, 256.0
        %v487 = vmul.f32 %v459, 256.0
        %v488 = vmul.f32 %v460, 256.0
        %v489 = vmul.f32 %v461, 256.0
        %v490 = vmul.f32 %v462, 256.0
        %v491 = vmul.f32 %v463, 256.0
        %v492 = vmul.f32 %v464, 256.0
        %v493 = vmul.f32 %v465, 256.0
        %v494 = vmul.f32 %v466, 256.0
        %v495 = vmul.f32 %v467, 256.0
        %v496 = vadd.f32 %v411, %v468
        %v497 = vadd.f32 %v412, %v469
        %v498 = vadd.f32 %v413, %v470
        %v499 = vadd.f32 %v414, %v471
        %v500 = vadd.f32 %v415, %v472
        %v501 = vadd.f32 %v416, %v473
        %v502 = vadd.f32 %v417, %v474
        %v503 = vadd.f32 %v418, %v475
        %v504 = vadd.f32 %v419, %v476
        %v505 = vadd.f32 %v420, %v477
        %v506 = vadd.f32 %v421, %v478
        %v507 = vadd.f32 %v422, %v479
        %v508 = vadd.f32 %v423, %v480
        %v509 = vadd.f32 %v424, %v481
        %v510 = vadd.f32 %v425, %v482
        %v511 = vadd.f32 %v426, %v483
        %v512 = vadd.f32 %v427, %v484
        %v513 = vadd.f32 %v428, %v485
        %v514 = vadd.f32 %v429, %v486
        %v515 = vadd.f32 %v430, %v487
        %v516 = vadd.f32 %v431, %v488
        %v517 = vadd.f32 %v432, %v489
        %v518 = vadd.f32 %v433, %v490
        %v519 = vadd.f32 %v434, %v491
        %v520 = vadd.f32 %v435, %v492
        %v521 = vadd.f32 %v436, %v493
        %v522 = vadd.f32 %v437, %v494
        %v523 = vadd.f32 %v438, %v495
        %524 = vst [vmem:[%s129] sm:$0xff] %v496
        %525 = vst [vmem:[%s129 + $0x8] sm:$0x3f] %v497
        %526 = vst [vmem:[%s129 + $0x10] sm:$0xff] %v498
        %527 = vst [vmem:[%s129 + $0x18] sm:$0x3f] %v499
        %528 = vst [vmem:[%s129 + $0x20] sm:$0xff] %v500
        %529 = vst [vmem:[%s129 + $0x28] sm:$0x3f] %v501
        %530 = vst [vmem:[%s129 + $0x30] sm:$0xff] %v502
        %531 = vst [vmem:[%s129 + $0x38] sm:$0x3f] %v503
        %532 = vst [vmem:[%s129 + $0x40] sm:$0xff] %v504
        %533 = vst [vmem:[%s129 + $0x48] sm:$0x3f] %v505
        %534 = vst [vmem:[%s129 + $0x50] sm:$0xff] %v506
        %535 = vst [vmem:[%s129 + $0x58] sm:$0x3f] %v507
        %536 = vst [vmem:[%s129 + $0x60] sm:$0xff] %v508
        %537 = vst [vmem:[%s129 + $0x68] sm:$0x3f] %v509
        %538 = vst [vmem:[%s129 + $0x70] sm:$0xff] %v510
        %539 = vst [vmem:[%s129 + $0x78] sm:$0x3f] %v511
        %540 = vst [vmem:[%s129 + $0x80] sm:$0xff] %v512
        %541 = vst [vmem:[%s129 + $0x88] sm:$0x3f] %v513
        %542 = vst [vmem:[%s129 + $0x90] sm:$0xff] %v514
        %543 = vst [vmem:[%s129 + $0x98] sm:$0x3f] %v515
        %544 = vst [vmem:[%s129 + $0xa0] sm:$0xff] %v516
        %545 = vst [vmem:[%s129 + $0xa8] sm:$0x3f] %v517
        %546 = vst [vmem:[%s129 + $0xb0] sm:$0xff] %v518
        %547 = vst [vmem:[%s129 + $0xb8] sm:$0x3f] %v519
        %548 = vst [vmem:[%s129 + $0xc0] sm:$0xff] %v520
        %549 = vst [vmem:[%s129 + $0xc8] sm:$0x3f] %v521
        %550 = vst [vmem:[%s129 + $0xd0] sm:$0xff] %v522
        %551 = vst [vmem:[%s129 + $0xd8] sm:$0x3f] %v523
        %s552 = sand.u32 %s49, 1
        %s553 = sand.u32 %s49, 1
        %s554 = smul.addr %s553, 224
        %s555 = scalar_lea.vmem [#allocation4], %s554
        // Predicated region
        $region29: #{conv2d_derivative.1} parent=23 // pred_check
          %p556 = pneg %p59
        $region30: #{conv2d_derivative.1} parent=23 // pred_check_branch
          %558 = sbr.rel (%p556) target = $region32
        $region31: #{conv2d_derivative.1} parent=23 // pred_region
          %s559 = smul.addr %s15, 8
          %s560 = scalar_lea.vmem %s1, %s559
          // Predicated region
          $region33: #{conv2d_derivative.1} parent=31 // pred_check
            _
          $region34: #{conv2d_derivative.1} parent=31 // pred_check_branch
            %562 = sbr.rel (0) target = $region36
          $region35: #{conv2d_derivative.1} parent=31 // pred_region
            // Predicated region
            $region37: #{conv2d_derivative.1} parent=35 // pred_check
              _
            $region38: #{conv2d_derivative.1} parent=35 // pred_check_branch
              %564 = sbr.rel (0) target = $region40
            $region39: #{conv2d_derivative.1} parent=35 // pred_region
              // Predicated region
              $region52: #{conv2d_derivative.1} parent=39 // pred_check
                _
              $region53: #{conv2d_derivative.1} parent=39 // pred_check_branch
                %634 = sbr.rel (0) target = $region55
              $region54: #{conv2d_derivative.1} parent=39 // pred_region
                loop: start=0, step=1, limit=1
                $region56: #{conv2d_derivative.1} parent=54 // loop_pre_header
                  _
                $region57: #{conv2d_derivative.1} parent=54 // loop_header
                  %s636 = sphi 0, %s640
                  %p637 = scmp.ge.s32.totalorder %s636, 1
                  %s641 = sphi %s555, %s555
                  %s642 = sphi %s560, %s560
                $region58: #{conv2d_derivative.1} parent=54 // loop_header_branch
                  %639 = sbr.rel (%p637) target = $region62
                $region59: #{conv2d_derivative.1} parent=54 // loop_body
                  %v643 = vld [vmem:[%s641] sm:$0xff]
                  %644 = vst [vmem:[%s642] sm:$0xff] %v643
                  %v645 = vld [vmem:[%s641 + $0x8] sm:$0xff]
                  %646 = vst [vmem:[%s642 + $0x10] sm:$0xff] %v645
                  %v647 = vld [vmem:[%s641 + $0x10] sm:$0xff]
                  %648 = vst [vmem:[%s642 + $0x20] sm:$0xff] %v647
                  %v649 = vld [vmem:[%s641 + $0x18] sm:$0xff]
                  %650 = vst [vmem:[%s642 + $0x30] sm:$0xff] %v649
                  %v651 = vld [vmem:[%s641 + $0x20] sm:$0xff]
                  %652 = vst [vmem:[%s642 + $0x40] sm:$0xff] %v651
                  %v653 = vld [vmem:[%s641 + $0x28] sm:$0xff]
                  %654 = vst [vmem:[%s642 + $0x50] sm:$0xff] %v653
                  %v655 = vld [vmem:[%s641 + $0x30] sm:$0xff]
                  %656 = vst [vmem:[%s642 + $0x60] sm:$0xff] %v655
                  %v657 = vld [vmem:[%s641 + $0x38] sm:$0xff]
                  %658 = vst [vmem:[%s642 + $0x70] sm:$0xff] %v657
                  %v659 = vld [vmem:[%s641 + $0x40] sm:$0xff]
                  %660 = vst [vmem:[%s642 + $0x80] sm:$0xff] %v659
                  %v661 = vld [vmem:[%s641 + $0x48] sm:$0xff]
                  %662 = vst [vmem:[%s642 + $0x90] sm:$0xff] %v661
                  %v663 = vld [vmem:[%s641 + $0x50] sm:$0xff]
                  %664 = vst [vmem:[%s642 + $0xa0] sm:$0xff] %v663
                  %v665 = vld [vmem:[%s641 + $0x58] sm:$0xff]
                  %666 = vst [vmem:[%s642 + $0xb0] sm:$0xff] %v665
                  %v667 = vld [vmem:[%s641 + $0x60] sm:$0xff]
                  %668 = vst [vmem:[%s642 + $0xc0] sm:$0xff] %v667
                  %v669 = vld [vmem:[%s641 + $0x68] sm:$0xff]
                  %670 = vst [vmem:[%s642 + $0xd0] sm:$0xff] %v669
                  %v671 = vld [vmem:[%s641 + $0x70] sm:$0xff]
                  %672 = vst [vmem:[%s642 + $0xe0] sm:$0xff] %v671
                  %v673 = vld [vmem:[%s641 + $0x78] sm:$0xff]
                  %674 = vst [vmem:[%s642 + $0xf0] sm:$0xff] %v673
                  %v675 = vld [vmem:[%s641 + $0x80] sm:$0xff]
                  %676 = vst [vmem:[%s642 + $0x100] sm:$0xff] %v675
                  %v677 = vld [vmem:[%s641 + $0x88] sm:$0xff]
                  %678 = vst [vmem:[%s642 + $0x110] sm:$0xff] %v677
                  %v679 = vld [vmem:[%s641 + $0x90] sm:$0xff]
                  %680 = vst [vmem:[%s642 + $0x120] sm:$0xff] %v679
                  %v681 = vld [vmem:[%s641 + $0x98] sm:$0xff]
                  %682 = vst [vmem:[%s642 + $0x130] sm:$0xff] %v681
                  %v683 = vld [vmem:[%s641 + $0xa0] sm:$0xff]
                  %684 = vst [vmem:[%s642 + $0x140] sm:$0xff] %v683
                  %v685 = vld [vmem:[%s641 + $0xa8] sm:$0xff]
                  %686 = vst [vmem:[%s642 + $0x150] sm:$0xff] %v685
                  %v687 = vld [vmem:[%s641 + $0xb0] sm:$0xff]
                  %688 = vst [vmem:[%s642 + $0x160] sm:$0xff] %v687
                  %v689 = vld [vmem:[%s641 + $0xb8] sm:$0xff]
                  %690 = vst [vmem:[%s642 + $0x170] sm:$0xff] %v689
                  %v691 = vld [vmem:[%s641 + $0xc0] sm:$0xff]
                  %692 = vst [vmem:[%s642 + $0x180] sm:$0xff] %v691
                  %v693 = vld [vmem:[%s641 + $0xc8] sm:$0xff]
                  %694 = vst [vmem:[%s642 + $0x190] sm:$0xff] %v693
                  %v695 = vld [vmem:[%s641 + $0xd0] sm:$0xff]
                  %696 = vst [vmem:[%s642 + $0x1a0] sm:$0xff] %v695
                  %v697 = vld [vmem:[%s641 + $0xd8] sm:$0xff]
                  %698 = vst [vmem:[%s642 + $0x1b0] sm:$0xff] %v697
                $region60: #{conv2d_derivative.1} parent=54 // loop_footer
                  %s640 = sadd.s32 1, %s636
                $region61: #{conv2d_derivative.1} parent=54 // loop_footer_branch
                  %635 = sbr.rel target = $region57
                $region62: #{conv2d_derivative.1} parent=54 // loop_exit
                  _
              $region55: #{conv2d_derivative.1} parent=39 // pred_fallthru
                _
              // Predicated region
              $region63: #{conv2d_derivative.1} parent=39 // pred_check
                _
              $region64: #{conv2d_derivative.1} parent=39 // pred_check_branch
                %700 = sbr.rel target = $region66
              $region65: #{conv2d_derivative.1} parent=39 // pred_region
                _
              $region66: #{conv2d_derivative.1} parent=39 // pred_fallthru
                _
            $region40: #{conv2d_derivative.1} parent=35 // pred_fallthru
              _
            // Predicated region
            $region41: #{conv2d_derivative.1} parent=35 // pred_check
              _
            $region42: #{conv2d_derivative.1} parent=35 // pred_check_branch
              %566 = sbr.rel target = $region44
            $region43: #{conv2d_derivative.1} parent=35 // pred_region
              %s568 = ssub.s32 256, 1
              loop: start=0, step=1, limit=1
              $region45: #{conv2d_derivative.1} parent=43 // loop_pre_header
                _
              $region46: #{conv2d_derivative.1} parent=43 // loop_header
                %s570 = sphi 0, %s574
                %p571 = scmp.ge.s32.totalorder %s570, 1
                %s575 = sphi %s555, %s555
                %s576 = sphi %s560, %s560
              $region47: #{conv2d_derivative.1} parent=43 // loop_header_branch
                %573 = sbr.rel (%p571) target = $region51
              $region48: #{conv2d_derivative.1} parent=43 // loop_body
                %v577 = vld [vmem:[%s575] sm:%s568]
                %578 = vst [vmem:[%s576] sm:%s568] %v577
                %v579 = vld [vmem:[%s575 + $0x8] sm:%s568]
                %580 = vst [vmem:[%s576 + $0x10] sm:%s568] %v579
                %v581 = vld [vmem:[%s575 + $0x10] sm:%s568]
                %582 = vst [vmem:[%s576 + $0x20] sm:%s568] %v581
                %v583 = vld [vmem:[%s575 + $0x18] sm:%s568]
                %584 = vst [vmem:[%s576 + $0x30] sm:%s568] %v583
                %v585 = vld [vmem:[%s575 + $0x20] sm:%s568]
                %586 = vst [vmem:[%s576 + $0x40] sm:%s568] %v585
                %v587 = vld [vmem:[%s575 + $0x28] sm:%s568]
                %588 = vst [vmem:[%s576 + $0x50] sm:%s568] %v587
                %v589 = vld [vmem:[%s575 + $0x30] sm:%s568]
                %590 = vst [vmem:[%s576 + $0x60] sm:%s568] %v589
                %v591 = vld [vmem:[%s575 + $0x38] sm:%s568]
                %592 = vst [vmem:[%s576 + $0x70] sm:%s568] %v591
                %v593 = vld [vmem:[%s575 + $0x40] sm:%s568]
                %594 = vst [vmem:[%s576 + $0x80] sm:%s568] %v593
                %v595 = vld [vmem:[%s575 + $0x48] sm:%s568]
                %596 = vst [vmem:[%s576 + $0x90] sm:%s568] %v595
                %v597 = vld [vmem:[%s575 + $0x50] sm:%s568]
                %598 = vst [vmem:[%s576 + $0xa0] sm:%s568] %v597
                %v599 = vld [vmem:[%s575 + $0x58] sm:%s568]
                %600 = vst [vmem:[%s576 + $0xb0] sm:%s568] %v599
                %v601 = vld [vmem:[%s575 + $0x60] sm:%s568]
                %602 = vst [vmem:[%s576 + $0xc0] sm:%s568] %v601
                %v603 = vld [vmem:[%s575 + $0x68] sm:%s568]
                %604 = vst [vmem:[%s576 + $0xd0] sm:%s568] %v603
                %v605 = vld [vmem:[%s575 + $0x70] sm:%s568]
                %606 = vst [vmem:[%s576 + $0xe0] sm:%s568] %v605
                %v607 = vld [vmem:[%s575 + $0x78] sm:%s568]
                %608 = vst [vmem:[%s576 + $0xf0] sm:%s568] %v607
                %v609 = vld [vmem:[%s575 + $0x80] sm:%s568]
                %610 = vst [vmem:[%s576 + $0x100] sm:%s568] %v609
                %v611 = vld [vmem:[%s575 + $0x88] sm:%s568]
                %612 = vst [vmem:[%s576 + $0x110] sm:%s568] %v611
                %v613 = vld [vmem:[%s575 + $0x90] sm:%s568]
                %614 = vst [vmem:[%s576 + $0x120] sm:%s568] %v613
                %v615 = vld [vmem:[%s575 + $0x98] sm:%s568]
                %616 = vst [vmem:[%s576 + $0x130] sm:%s568] %v615
                %v617 = vld [vmem:[%s575 + $0xa0] sm:%s568]
                %618 = vst [vmem:[%s576 + $0x140] sm:%s568] %v617
                %v619 = vld [vmem:[%s575 + $0xa8] sm:%s568]
                %620 = vst [vmem:[%s576 + $0x150] sm:%s568] %v619
                %v621 = vld [vmem:[%s575 + $0xb0] sm:%s568]
                %622 = vst [vmem:[%s576 + $0x160] sm:%s568] %v621
                %v623 = vld [vmem:[%s575 + $0xb8] sm:%s568]
                %624 = vst [vmem:[%s576 + $0x170] sm:%s568] %v623
                %v625 = vld [vmem:[%s575 + $0xc0] sm:%s568]
                %626 = vst [vmem:[%s576 + $0x180] sm:%s568] %v625
                %v627 = vld [vmem:[%s575 + $0xc8] sm:%s568]
                %628 = vst [vmem:[%s576 + $0x190] sm:%s568] %v627
                %v629 = vld [vmem:[%s575 + $0xd0] sm:%s568]
                %630 = vst [vmem:[%s576 + $0x1a0] sm:%s568] %v629
                %v631 = vld [vmem:[%s575 + $0xd8] sm:%s568]
                %632 = vst [vmem:[%s576 + $0x1b0] sm:%s568] %v631
              $region49: #{conv2d_derivative.1} parent=43 // loop_footer
                %s574 = sadd.s32 1, %s570
              $region50: #{conv2d_derivative.1} parent=43 // loop_footer_branch
                %569 = sbr.rel target = $region46
              $region51: #{conv2d_derivative.1} parent=43 // loop_exit
                _
            $region44: #{conv2d_derivative.1} parent=35 // pred_fallthru
              _
          $region36: #{conv2d_derivative.1} parent=31 // pred_fallthru
            _
          %701 = vnop
        $region32: #{conv2d_derivative.1} parent=23 // pred_fallthru
          _
      $region24: #{conv2d_derivative.1} parent=5 // pred_fallthru
        _
      %p702 = scmp.le.s32.totalorder 2, %s10
      // Predicated region
      $region67: #{conv2d_derivative.1} parent=5 // pred_check
        %p703 = pneg %p702
      $region68: #{conv2d_derivative.1} parent=5 // pred_check_branch
        %705 = sbr.rel (%p703) target = $region70
      $region69: #{conv2d_derivative.1} parent=5 // pred_region
        %s706 = ssub.s32 %s10, 2
        // Predicated region
        $region71: #{conv2d_derivative.1} parent=69 // pred_check
          %p707 = pneg %p65
        $region72: #{conv2d_derivative.1} parent=69 // pred_check_branch
          %709 = sbr.rel (%p707) target = $region74
        $region73: #{conv2d_derivative.1} parent=69 // pred_region
          %s710 = sand.u32 %s50, 1
          %s711 = sand.u32 %s50, 1
          %s712 = smul.addr %s711, 224
          %s713 = scalar_lea.vmem [#allocation4], %s712
        $region74: #{conv2d_derivative.1} parent=69 // pred_fallthru
          _
      $region70: #{conv2d_derivative.1} parent=5 // pred_fallthru
        _
    $region6: #{conv2d_derivative.1} parent=1 // loop_footer
      %s14 = sadd.s32 1, %s10
    $region7: #{conv2d_derivative.1} parent=1 // loop_footer_branch
      %9 = sbr.rel target = $region3
    $region8: #{conv2d_derivative.1} parent=1 // loop_exit
      _
    %714 = vsyncpa [#allocation3], 1
    %s715 = scalar_lea.sflag [#allocation3], 1
    %716 = vsyncpa %s715, 1

</llo_original>
